<compile_context>
chip_gen: v7x
topology: tpu7x:2x2x1
jax: 0.10.0
libtpu: 0.0.40
codegen_flags: <defaults>
</compile_context>

<pallas_src>
import functools

import jax
import jax.numpy as jnp
from jax.experimental import pallas as pl
from jax.experimental.pallas import tpu as pltpu


def _truncation_kernel(w_ref, scale_ref, bias_ref, out_ref):
    """out = w * scale + bias   (affine form of  w_avg + (w - w_avg) * coefs).

    Works for both block layouts used by the wrapper:
      * 3-D blocks: w (TB, 1, D) x scale/bias (1, L, D) -> out (TB, L, D)
      * 2-D blocks: w (TB, L*D) x scale/bias (1, L*D)   -> out (TB, L*D)
    scale/bias are f32; math is done in f32 and cast once on store.
    """
    w = w_ref[...].astype(jnp.float32)
    out_ref[...] = (w * scale_ref[...] + bias_ref[...]).astype(out_ref.dtype)


def _tpu_hints():
    """Return (tensorcores_per_chip, vmem_budget_bytes, vmem_limit_bytes|None)."""
    try:
        kind = jax.devices()[0].device_kind.lower()
    except Exception:
        kind = ""
    mib = 1024 * 1024
    if "v7" in kind:                               # 2 TCs/chip, 64 MiB VMEM/TC
        return 2, 20 * mib, 24 * mib
    if "v6" in kind:                               # 1 TC/chip, 128 MiB VMEM
        return 1, 40 * mib, 48 * mib
    if "v5 lite" in kind or "v5e" in kind or "v5litepod" in kind:
        return 1, 14 * mib, 16 * mib               # 1 TC/chip, 16 MiB scoped default
    # Unknown generation (v4/v5p megacore, interpret, ...): conservative budget,
    # assume 2 TCs so megacore chips still get a split grid.
    return 2, 12 * mib, None


def _sublane_tile(itemsize):
    return max(8, 32 // int(itemsize))


def _choose_batch_block(n, in_row_bytes, out_row_bytes, resident_bytes,
                        itemsize, num_tensorcores, vmem_budget_bytes):
    """Pick TB so double-buffered in/out tiles + resident scale/bias fit VMEM."""
    sub = _sublane_tile(itemsize)
    per_row = 2 * (in_row_bytes + out_row_bytes)          # double-buffered in + out
    tb = (vmem_budget_bytes - resident_bytes) // per_row
    tb = int(max(1, min(tb, n)))
    # Only split the batch across grid steps when there is more than one
    # TensorCore to feed (v7x); on single-TC v5e/v6e one big tile is best.
    if num_tensorcores >= 2 and n >= 2 * sub:
        target_steps = 2 * num_tensorcores                # >= 2 steps per core
        tb = min(tb, pl.cdiv(n, target_steps))
    # Keep partial blocks sublane-aligned so stores stay unmasked and DMA
    # descriptors stay aligned.
    if tb < n:
        tb = max(sub, (tb // sub) * sub)
    return int(max(1, min(tb, n)))


@functools.partial(jax.jit,
                   static_argnames=("num_layers", "w_space_dim", "batch_block"))
def truncation_forward(w, w_avg, coefs, *, num_layers, w_space_dim,
                       batch_block=None):
    """JAX wrapper matching TruncationModule.forward."""
    L, D = num_layers, w_space_dim
    if w.ndim == 2:
        assert w.shape[1] == D
        input_is_2d = True
    else:
        assert w.ndim == 3 and w.shape[1] == L and w.shape[2] == D
        input_is_2d = False
    N = w.shape[0]
    out_dtype = w.dtype
    itemsize = jnp.dtype(w.dtype).itemsize

    # Fold buffers into an affine pair once, in f32 (matches PyTorch's f32
    # buffers even when w is bf16/fp16):
    #   w_avg + (w - w_avg) * coefs  ==  w * coefs + w_avg * (1 - coefs)
    coefs_f32 = coefs.reshape(L, 1).astype(jnp.float32)              # (L, 1)
    w_avg_f32 = w_avg.reshape(1, D).astype(jnp.float32)              # (1, D)
    scale2d = jnp.broadcast_to(coefs_f32, (L, D))                    # (L, D) f32
    bias2d = w_avg_f32 * (1.0 - coefs_f32)                           # (L, D) f32

    num_tc, vmem_budget, vmem_limit = _tpu_hints()
    resident = 2 * (2 * L * D * 4)           # scale + bias, double-buffered, f32
    cparams = pltpu.CompilerParams(dimension_semantics=("parallel",),
                                   vmem_limit_bytes=vmem_limit)

    if input_is_2d:
        # (N, 1, D) streamed; layer broadcast happens inside the kernel so each
        # w row is fetched from HBM once instead of L times.
        if batch_block is None:
            tb = _choose_batch_block(N, D * itemsize, L * D * itemsize,
                                     resident, itemsize, num_tc, vmem_budget)
        else:
            tb = int(min(batch_block, N))
        return pl.pallas_call(
            _truncation_kernel,
            out_shape=jax.ShapeDtypeStruct((N, L, D), out_dtype),
            grid=(pl.cdiv(N, tb),),
            in_specs=[
                pl.BlockSpec((tb, 1, D), lambda i: (i, 0, 0)),   # batched w slab
                pl.BlockSpec((1, L, D), lambda i: (0, 0, 0)),    # scale (resident)
                pl.BlockSpec((1, L, D), lambda i: (0, 0, 0)),    # bias  (resident)
            ],
            out_specs=pl.BlockSpec((tb, L, D), lambda i: (i, 0, 0)),
            compiler_params=cparams,
        )(w[:, None, :], scale2d[None], bias2d[None])

    # 3-D input: flatten to a lane-dense (N, L*D) slab (free reshape on a
    # contiguous array).  Kills sublane padding for odd L and makes every
    # store a wide unmasked vst.
    LD = L * D
    if batch_block is None:
        tb = _choose_batch_block(N, LD * itemsize, LD * itemsize,
                                 resident, itemsize, num_tc, vmem_budget)
    else:
        tb = int(min(batch_block, N))
    out = pl.pallas_call(
        _truncation_kernel,
        out_shape=jax.ShapeDtypeStruct((N, LD), out_dtype),
        grid=(pl.cdiv(N, tb),),
        in_specs=[
            pl.BlockSpec((tb, LD), lambda i: (i, 0)),            # batched w slab
            pl.BlockSpec((1, LD), lambda i: (0, 0)),             # scale (resident)
            pl.BlockSpec((1, LD), lambda i: (0, 0)),             # bias  (resident)
        ],
        out_specs=pl.BlockSpec((tb, LD), lambda i: (i, 0)),
        compiler_params=cparams,
    )(w.reshape(N, LD), scale2d.reshape(1, LD), bias2d.reshape(1, LD))
    return out.reshape(N, L, D)


def make_truncation_buffers(num_layers, w_space_dim, truncation_psi,
                            truncation_layers, key=None):
    """Deterministically build the module's buffers (as a checkpoint would)."""
    if truncation_psi is not None and truncation_layers is not None:
        psi, tl = truncation_psi, truncation_layers
    else:
        psi, tl = 1.0, 0
    layer_idx = jnp.arange(num_layers)
    coefs = jnp.where(layer_idx < tl, jnp.float32(psi), jnp.float32(1.0))  # (L,)
    if key is None:
        w_avg = jnp.zeros((w_space_dim,), jnp.float32)
    else:
        w_avg = jax.random.normal(key, (w_space_dim,), jnp.float32)
    return w_avg, coefs


def _reference_forward(w, w_avg, coefs, num_layers, w_space_dim):
    """Pure-JAX reference mirroring the PyTorch forward (f32 math)."""
    if w.ndim == 2:
        w = jnp.broadcast_to(w[:, None, :], (w.shape[0], num_layers, w_space_dim))
    w = w.astype(jnp.float32)
    w_avg_b = w_avg.reshape(1, 1, w_space_dim).astype(jnp.float32)
    coefs_b = coefs.reshape(1, num_layers, 1).astype(jnp.float32)
    return w_avg_b + (w - w_avg_b) * coefs_b


if __name__ == "__main__":
    # Small, TPU-friendly shapes: batch=4, num_layers=8, w_space_dim=128.
    NUM_LAYERS = 8
    W_DIM = 128
    PSI = 0.7
    TRUNC_LAYERS = 4
    BATCH = 4

    key = jax.random.PRNGKey(0)
    k_w2, k_w3, k_wo, k_avg = jax.random.split(key, 4)

    w_avg, coefs = make_truncation_buffers(NUM_LAYERS, W_DIM, PSI, TRUNC_LAYERS,
                                           key=k_avg)

    # Case 1: 2D latent input (N, D) -> broadcast over layers inside the kernel.
    w2d = jax.random.normal(k_w2, (BATCH, W_DIM), jnp.float32)
    out2d = jax.block_until_ready(
        truncation_forward(w2d, w_avg, coefs,
                           num_layers=NUM_LAYERS, w_space_dim=W_DIM))
    ref2d = _reference_forward(w2d, w_avg, coefs, NUM_LAYERS, W_DIM)

    # Case 2: 3D latent input (N, L, D) -> flattened lane-dense path.
    w3d = jax.random.normal(k_w3, (BATCH, NUM_LAYERS, W_DIM), jnp.float32)
    out3d = jax.block_until_ready(
        truncation_forward(w3d, w_avg, coefs,
                           num_layers=NUM_LAYERS, w_space_dim=W_DIM))
    ref3d = _reference_forward(w3d, w_avg, coefs, NUM_LAYERS, W_DIM)

    # Case 3: odd batch (partial / full-extent last block).
    w_odd = jax.random.normal(k_wo, (3, NUM_LAYERS, W_DIM), jnp.float32)
    out_odd = jax.block_until_ready(
        truncation_forward(w_odd, w_avg, coefs,
                           num_layers=NUM_LAYERS, w_space_dim=W_DIM))
    ref_odd = _reference_forward(w_odd, w_avg, coefs, NUM_LAYERS, W_DIM)

    # Case 4: bf16 input (f32 math in-kernel, single rounding on store).
    w_bf16 = w3d.astype(jnp.bfloat16)
    out_bf16 = jax.block_until_ready(
        truncation_forward(w_bf16, w_avg, coefs,
                           num_layers=NUM_LAYERS, w_space_dim=W_DIM))
    ref_bf16 = _reference_forward(w_bf16, w_avg, coefs, NUM_LAYERS, W_DIM)

    assert out2d.shape == (BATCH, NUM_LAYERS, W_DIM)
    assert out3d.shape == (BATCH, NUM_LAYERS, W_DIM)
    assert out_odd.shape == (3, NUM_LAYERS, W_DIM)
    assert out_bf16.shape == (BATCH, NUM_LAYERS, W_DIM)
    assert out_bf16.dtype == jnp.bfloat16
    assert jnp.allclose(out2d, ref2d, atol=1e-6, rtol=1e-6)
    assert jnp.allclose(out3d, ref3d, atol=1e-6, rtol=1e-6)
    assert jnp.allclose(out_odd, ref_odd, atol=1e-6, rtol=1e-6)
    assert jnp.allclose(out_bf16.astype(jnp.float32), ref_bf16,
                        atol=5e-2, rtol=5e-2)

    print("KERNEL_OK")
</pallas_src>

<mosaic_0001>
module attributes {stable_mosaic.version = 11 : i64} {
  func.func @_truncation_kernel(%arg0: i32, %arg1: memref<4x1x128xf32, #tpu.memory_space<vmem>>, %arg2: memref<1x8x128xf32, #tpu.memory_space<vmem>>, %arg3: memref<1x8x128xf32, #tpu.memory_space<vmem>>, %arg4: memref<4x8x128xf32, #tpu.memory_space<vmem>>) attributes {dimension_semantics = [#tpu.dimension_semantics<parallel>], iteration_bounds = array<i64: 1>, scalar_prefetch = 0 : i64, scratch_operands = 0 : i64, tpu.core_type = #tpu.core_type<tc>, window_params = [{transform_indices = @transform_0, window_bounds = array<i64: 4, 1, 128>}, {pipeline_mode = #tpu.pipeline_mode<synchronous>, transform_indices = @transform_1, window_bounds = array<i64: 1, 8, 128>}, {pipeline_mode = #tpu.pipeline_mode<synchronous>, transform_indices = @transform_2, window_bounds = array<i64: 1, 8, 128>}, {transform_indices = @transform_3, window_bounds = array<i64: 4, 8, 128>}]} {
    %c0 = arith.constant 0 : index
    %c0_0 = arith.constant 0 : index
    %c0_1 = arith.constant 0 : index
    %0 = vector.load %arg1[%c0, %c0_0, %c0_1] : memref<4x1x128xf32, #tpu.memory_space<vmem>>, vector<4x1x128xf32>
    %c0_2 = arith.constant 0 : index
    %c0_3 = arith.constant 0 : index
    %c0_4 = arith.constant 0 : index
    %1 = vector.load %arg2[%c0_2, %c0_3, %c0_4] : memref<1x8x128xf32, #tpu.memory_space<vmem>>, vector<1x8x128xf32>
    %2 = vector.broadcast %0 : vector<4x1x128xf32> to vector<4x8x128xf32>
    %3 = vector.broadcast %1 : vector<1x8x128xf32> to vector<4x8x128xf32>
    %4 = arith.mulf %2, %3 : vector<4x8x128xf32>
    %c0_5 = arith.constant 0 : index
    %c0_6 = arith.constant 0 : index
    %c0_7 = arith.constant 0 : index
    %5 = vector.load %arg3[%c0_5, %c0_6, %c0_7] : memref<1x8x128xf32, #tpu.memory_space<vmem>>, vector<1x8x128xf32>
    %6 = vector.broadcast %5 : vector<1x8x128xf32> to vector<4x8x128xf32>
    %7 = arith.addf %4, %6 : vector<4x8x128xf32>
    %c0_8 = arith.constant 0 : index
    %c0_9 = arith.constant 0 : index
    %c0_10 = arith.constant 0 : index
    %8 = vector.load %arg4[%c0_8, %c0_9, %c0_10] : memref<4x8x128xf32, #tpu.memory_space<vmem>>, vector<4x8x128xf32>
    tpu.vector_store %arg4[%c0_8, %c0_9, %c0_10], %7 {strides = array<i32>} : memref<4x8x128xf32, #tpu.memory_space<vmem>>, vector<4x8x128xf32>,
    return
  }
  func.func @transform_0(%arg0: i32) -> (i32, i32, i32) {
    %c0_i32 = arith.constant 0 : i32
    %c0_i32_0 = arith.constant 0 : i32
    %c0_i32_1 = arith.constant 0 : i32
    return %arg0, %c0_i32, %c0_i32_0 : i32, i32, i32
  }
  func.func @transform_1(%arg0: i32) -> (i32, i32, i32) {
    %c0_i32 = arith.constant 0 : i32
    %c0_i32_0 = arith.constant 0 : i32
    %c0_i32_1 = arith.constant 0 : i32
    %c0_i32_2 = arith.constant 0 : i32
    return %c0_i32, %c0_i32_0, %c0_i32_1 : i32, i32, i32
  }
  func.func @transform_2(%arg0: i32) -> (i32, i32, i32) {
    %c0_i32 = arith.constant 0 : i32
    %c0_i32_0 = arith.constant 0 : i32
    %c0_i32_1 = arith.constant 0 : i32
    %c0_i32_2 = arith.constant 0 : i32
    return %c0_i32, %c0_i32_0, %c0_i32_1 : i32, i32, i32
  }
  func.func @transform_3(%arg0: i32) -> (i32, i32, i32) {
    %c0_i32 = arith.constant 0 : i32
    %c0_i32_0 = arith.constant 0 : i32
    %c0_i32_1 = arith.constant 0 : i32
    return %arg0, %c0_i32, %c0_i32_0 : i32, i32, i32
  }
}

</mosaic_0001>

<llo_original>
// kernel: truncation_forward.1
$region0: #{truncation_forward.1}
  #allocation0 [shape = 'u32[]', space=smem, size = 0x4, offset = 0x4, fixed_abs, tag = 'smem constant byte address 0x4 - core index']
  #allocation1 [shape = 'u32[144,128]{1,0:T(1,128)}', space=vmem, size = 0x12000, scoped, tag = 'internal scratch']
  %s0 = inlined_call_operand.vmem [shape: f32[4,1,128], index: 0, kind: input, shape index: {}]
  %s1 = inlined_call_operand.vmem [shape: f32[1,8,128], index: 1, kind: input, shape index: {}]
  %s2 = inlined_call_operand.vmem [shape: f32[1,8,128], index: 2, kind: input, shape index: {}]
  %s3 = inlined_call_operand.hbm [shape: f32[4,8,128], index: 3, kind: output, shape index: {}]
  %s4 = sld [smem:[#allocation0]]
  $region22: #{truncation_forward.1} parent=0
    _
  %s6 = ssub.s32 1, %s4
  %s7 = scalar_select 0, %s6, %s4
  $region1: #{truncation_forward.1} parent=0
    #allocation2 [shape = 'u8[16384]{0}', space=vmem, size = 0x4000, scoped, tag = 'output window, operand 0, single buffered']
    #allocation3 [shape = 's32[1]{0}', space=sflag, size = 0x4, scoped, tag = 'scoped memory for truncation_forward.1']
    %8 = vsyncpa [#allocation3], 0
    // Predicated region
    $region2: #{truncation_forward.1} parent=1 // pred_check
      _
    $region3: #{truncation_forward.1} parent=1 // pred_check_branch
      %10 = sbr.rel (0) target = $region5
    $region4: #{truncation_forward.1} parent=1 // pred_region
      _
    $region5: #{truncation_forward.1} parent=1 // pred_fallthru
      _
    // Predicated region
    $region6: #{truncation_forward.1} parent=1 // pred_check
      _
    $region7: #{truncation_forward.1} parent=1 // pred_check_branch
      %12 = sbr.rel (0) target = $region9
    $region8: #{truncation_forward.1} parent=1 // pred_region
      _
    $region9: #{truncation_forward.1} parent=1 // pred_fallthru
      _
    // Predicated region
    $region10: #{truncation_forward.1} parent=1 // pred_check
      _
    $region11: #{truncation_forward.1} parent=1 // pred_check_branch
      %14 = sbr.rel (0) target = $region13
    $region12: #{truncation_forward.1} parent=1 // pred_region
      _
    $region13: #{truncation_forward.1} parent=1 // pred_fallthru
      _
    %v15 = vld [vmem:[%s0] sm:$0x1]
    %v16 = vld [vmem:[%s0 + $0x1] sm:$0x1]
    %v17 = vld [vmem:[%s0 + $0x2] sm:$0x1]
    %v18 = vld [vmem:[%s0 + $0x3] sm:$0x1]
    %v19 = vld [vmem:[%s1] sm:$0xff]
    %v24 = vlaneseq
    %v25 = vshrl.u32 %v24, 7
    %v26 = vsub.s32 0, %v25
    %v27 = vrot.slane %v15, %v26
    %v28 = vlaneseq
    %v29 = vshrl.u32 %v28, 7
    %v30 = vsub.s32 0, %v29
    %v31 = vrot.slane %v16, %v30
    %v32 = vlaneseq
    %v33 = vshrl.u32 %v32, 7
    %v34 = vsub.s32 0, %v33
    %v35 = vrot.slane %v17, %v34
    %v36 = vlaneseq
    %v37 = vshrl.u32 %v36, 7
    %v38 = vsub.s32 0, %v37
    %v39 = vrot.slane %v18, %v38
    %v44 = vmul.f32 %v27, %v19
    %v45 = vmul.f32 %v31, %v19
    %v46 = vmul.f32 %v35, %v19
    %v47 = vmul.f32 %v39, %v19
    %v48 = vld [vmem:[%s2] sm:$0xff]
    %v49 = vadd.f32 %v44, %v48
    %v50 = vadd.f32 %v45, %v48
    %v51 = vadd.f32 %v46, %v48
    %v52 = vadd.f32 %v47, %v48
    %53 = vst [vmem:[#allocation2] sm:$0xff] %v49
    %54 = vst [vmem:[#allocation2 + $0x8] sm:$0xff] %v50
    %55 = vst [vmem:[#allocation2 + $0x10] sm:$0xff] %v51
    %56 = vst [vmem:[#allocation2 + $0x18] sm:$0xff] %v52
    // Predicated region
    $region14: #{truncation_forward.1} parent=1 // pred_check
      _
    $region15: #{truncation_forward.1} parent=1 // pred_check_branch
      %58 = sbr.rel (0) target = $region17
    $region16: #{truncation_forward.1} parent=1 // pred_region
      %s60 = ssub.s32 512, 512
      %61 = vsyncadd [#allocation3], %s60
      %s62 = sshll.u32 [#allocation2], 4
      %s63 = int_to_ptr.vmem [resolvable:$true] %s62
      %68 = dma.vmem_to_hbm [thread:$0]  %s63, 512, %s3, [#allocation3], 128, 128, 8
    $region17: #{truncation_forward.1} parent=1 // pred_fallthru
      _
    // Predicated region
    $region18: #{truncation_forward.1} parent=1 // pred_check
      _
    $region19: #{truncation_forward.1} parent=1 // pred_check_branch
      %70 = sbr.rel (0) target = $region21
    $region20: #{truncation_forward.1} parent=1 // pred_region
      %71 = dma.done [#allocation3], 512
    $region21: #{truncation_forward.1} parent=1 // pred_fallthru
      _
    %72 = vsyncpa [#allocation3], 1

</llo_original>
